<compile_context>
chip_gen: v7x
topology: tpu7x:2x2x1
jax: 0.10.0
libtpu: 0.0.40
codegen_flags: <defaults>
</compile_context>

<pallas_src>
import functools
import math

import jax
import jax.numpy as jnp
from jax import lax
from jax.experimental import pallas as pl
from jax.experimental.pallas import tpu as pltpu


# --------------------------------------------------------------------------
# shared per-tile math (pure VPU/EUP elementwise, f32)
# --------------------------------------------------------------------------
def _loss_tile(x, t, w, *, b, log_space, relative, relative_eps, clip,
               soft_clamp_value, use_reciprocal, approx_reciprocal,
               weight_const):
    finite = jnp.isfinite(t)
    t_safe = jnp.where(finite, t, 0.0)

    # torch.nn.functional.softplus (beta=1, threshold=20)
    sp = jnp.where(x > 20.0, x, jnp.log1p(jnp.exp(jnp.minimum(x, 20.0))))

    # l1 distance (log_space=False in the default configuration)
    if log_space:
        d = jnp.abs(jnp.log(jnp.maximum(sp, 1e-20)) -
                    jnp.log(jnp.maximum(t_safe, 1e-20)))
    else:
        d = jnp.abs(sp - t_safe)

    if clip is not None:
        d = jnp.clip(d, clip[0], clip[1])

    # relative denominator: b * (relative_eps + t)
    if relative:
        denom = b * (relative_eps + t_safe)
        if use_reciprocal or approx_reciprocal:
            r = pl.reciprocal(denom, approx=True)       # EUP slot, nearly free
            if not approx_reciprocal:
                r = r * (2.0 - denom * r)                # 1 Newton step -> ~f32
            d = d * r
        else:
            d = d / denom
    else:
        d = d * (1.0 / b)          # compile-time constant reciprocal

    # SoftClamp: x > v  ->  v + log(1 - v + x)
    # (log argument on the selected branch is always > 1; the unselected
    #  branch is discarded by the where, so no extra guard is needed)
    if soft_clamp_value is not None:
        above = d > soft_clamp_value
        d = jnp.where(above,
                      soft_clamp_value + jnp.log(1.0 - soft_clamp_value + d),
                      d)

    # smooth_l1_loss(d, 0, reduction='none'), beta=1.
    # d >= 0 by construction (abs / clip / soft-clamp), so skip the abs
    # unless a negative clip floor was requested.
    ad = jnp.abs(d) if (clip is not None and clip[0] < 0) else d
    loss = jnp.where(ad < 1.0, 0.5 * d * d, ad - 0.5)

    # mask non-finite targets
    loss = jnp.where(finite, loss, 0.0)

    # weights: tiny per-row column / full array / compile-time scalar
    if w is not None:
        loss = loss * w
    elif weight_const is not None:
        loss = loss * weight_const

    return loss, finite.astype(jnp.float32)


# --------------------------------------------------------------------------
# kernels
# --------------------------------------------------------------------------
def _dense_kernel(*refs, has_weights, return_mask, **params):
    idx = 2
    x_ref, t_ref = refs[0], refs[1]
    w_ref = None
    if has_weights:
        w_ref = refs[idx]
        idx += 1
    o_ref = refs[idx]
    idx += 1
    m_ref = refs[idx] if return_mask else None

    x = x_ref[...].astype(jnp.float32)                  # cast in-tile (no host pass)
    t = t_ref[...].astype(jnp.float32)
    w = w_ref[...].astype(jnp.float32) if w_ref is not None else None

    loss, finite_f = _loss_tile(x, t, w, **params)
    o_ref[...] = loss
    if return_mask:
        m_ref[...] = finite_f.astype(m_ref.dtype)


def _sum_kernel(*refs, has_weights, rows, cols, br, bc, **params):
    if has_weights:
        x_ref, t_ref, w_ref, s_ref, c_ref = refs
        w = w_ref[...].astype(jnp.float32)
    else:
        x_ref, t_ref, s_ref, c_ref = refs
        w = None

    x = x_ref[...].astype(jnp.float32)
    t = t_ref[...].astype(jnp.float32)
    loss, finite_f = _loss_tile(x, t, w, **params)

    # in-kernel tail mask for ragged edge blocks (static python bools)
    row_ragged = (pl.cdiv(rows, br) * br) != rows
    col_ragged = (pl.cdiv(cols, bc) * bc) != cols
    if row_ragged or col_ragged:
        valid = None
        if row_ragged:
            rid = lax.broadcasted_iota(jnp.int32, (br, bc), 0) + pl.program_id(0) * br
            valid = rid < rows
        if col_ragged:
            cid = lax.broadcasted_iota(jnp.int32, (br, bc), 1) + pl.program_id(1) * bc
            cv = cid < cols
            valid = cv if valid is None else (valid & cv)
        loss = jnp.where(valid, loss, 0.0)
        finite_f = jnp.where(valid, finite_f, 0.0)

    # VALU-only partial reduce to an (8, 128) per-block tile (vreg-aligned
    # static slices, no cross-lane/sublane XLU work in the hot loop).
    def _fold(v):
        a = v[0:8, :]
        for rr in range(1, br // 8):
            a = a + v[rr * 8:(rr + 1) * 8, :]
        out = a[:, 0:128]
        for cc in range(1, bc // 128):
            out = out + a[:, cc * 128:(cc + 1) * 128]
        return out

    s_ref[...] = _fold(loss)
    c_ref[...] = _fold(finite_f)


# --------------------------------------------------------------------------
# host-side helpers
# --------------------------------------------------------------------------
def _round_up(v, m):
    return -(-v // m) * m


def _select(a, idx):
    """Static slice when indices are contiguous (no gather pass)."""
    idx = list(idx)
    if idx == list(range(idx[0], idx[0] + len(idx))):
        return a[..., idx[0]:idx[0] + len(idx)]
    return jnp.take(a, jnp.asarray(idx), axis=-1)


def _sublane_multiple(dtypes):
    m = 8
    for d in dtypes:
        it = max(1, jnp.dtype(d).itemsize)
        m = max(m, 8 * max(1, 4 // it))
    return m


def _block_config():
    """(target block elems, vmem limit) — larger blocks on 128-MiB-VMEM chips."""
    target, limit = 512 * 1024, 32 * 1024 * 1024          # 2 MiB f32 blocks
    try:
        info = pltpu.get_tpu_info()
        vmem = getattr(info, "vmem_capacity_bytes", 0) or 0
        if vmem >= 100 * 1024 * 1024:                      # v5e / v6e
            target, limit = 1024 * 1024, 64 * 1024 * 1024  # 4 MiB blocks
    except Exception:
        pass
    return target, limit


def _choose_blocks(R, C, sub, target, block_rows, block_cols):
    r_pad = _round_up(max(R, 1), sub)
    c_pad = _round_up(max(C, 1), 128)
    br = None if block_rows is None else max(sub, min(r_pad, _round_up(block_rows, sub)))
    bc = None if block_cols is None else max(128, min(c_pad, _round_up(block_cols, 128)))
    if br is not None and bc is not None:
        return br, bc
    if br is None and bc is None:
        if r_pad * c_pad <= target:
            return r_pad, c_pad
        if c_pad * sub <= target:
            bc = c_pad
            br = max(sub, min(r_pad, (target // bc) // sub * sub))
        else:
            br = max(sub, min(r_pad, _round_up(min(r_pad, 256), sub)))
            bc = max(128, min(c_pad, (target // br) // 128 * 128))
        return br, bc
    if br is None:
        br = max(sub, min(r_pad, (target // bc) // sub * sub))
    else:
        bc = max(128, min(c_pad, (target // br) // 128 * 128))
    return br, bc


def _prepare(x_all, t_all, xi, ti, weights):
    """Select components and view as (B*F, H*W*Csel) — free reshapes, no cast/pad."""
    x = _select(x_all, xi)
    t = _select(t_all, ti)
    assert x.shape == t.shape, "xi / ti selections must have matching shapes"
    sel_shape = x.shape
    B, F = sel_shape[0], sel_shape[1]
    R = B * F
    HWc = int(math.prod(sel_shape[2:])) if len(sel_shape) > 2 else 1
    x2 = jnp.reshape(x, (R, HWc))
    t2 = jnp.reshape(t, (R, HWc))

    w_arr, w_mode, w_const = None, None, None
    if weights is not None:
        if isinstance(weights, (int, float)) and not isinstance(weights, bool):
            w_const = float(weights)                       # folded as a constant
        else:
            w = jnp.asarray(weights)
            w5 = jnp.reshape(w, (1,) * (len(sel_shape) - w.ndim) + w.shape)
            if w5.size == 1:
                w_arr = jnp.broadcast_to(jnp.reshape(w5, (1, 1)),
                                         (R, 1)).astype(jnp.float32)
                w_mode = "row"
            elif all(int(s) == 1 for s in w5.shape[2:]):
                # per-field weights -> tiny (B*F, 1) column, no full-size stream
                w_arr = jnp.broadcast_to(
                    jnp.reshape(w5, (w5.shape[0], w5.shape[1])),
                    (B, F)).reshape(R, 1).astype(jnp.float32)
                w_mode = "row"
            else:
                # spatially varying weights: correctness fallback (full stream)
                w_arr = jnp.broadcast_to(w5, sel_shape).reshape(R, HWc).astype(jnp.float32)
                w_mode = "full"
    return x2, t2, w_arr, w_mode, w_const, sel_shape, R, HWc


def _weight_inputs(w_arr, w_mode, data_spec, br):
    if w_mode == "row":
        return [pl.BlockSpec((br, 1), lambda i, j: (i, 0))], [w_arr]
    if w_mode == "full":
        return [data_spec], [w_arr]
    return [], []


# --------------------------------------------------------------------------
# public wrappers
# --------------------------------------------------------------------------
def scale_loss(x_all, t_all, xi, ti, *, b=1.0, log_space=False, relative=True,
               relative_eps=0.1, clip=None, soft_clamp_value=5.0, weights=None,
               return_mask=False, mask_dtype=jnp.float32,
               use_reciprocal=True, approx_reciprocal=False,
               block_rows=None, block_cols=None):
    """Dense Scale loss.

    Returns the per-element loss shaped like the selected components
    (non-finite targets give exactly 0).  With return_mask=True also returns
    the finite-target mask (1.0/0.0) produced in-kernel.
    """
    x2, t2, w_arr, w_mode, w_const, sel_shape, R, HWc = _prepare(
        x_all, t_all, xi, ti, weights)

    dts = [x2.dtype, t2.dtype, jnp.float32]
    if return_mask:
        dts.append(jnp.dtype(mask_dtype))
    sub = _sublane_multiple(dts)
    target, vmem_limit = _block_config()
    br, bc = _choose_blocks(R, HWc, sub, target, block_rows, block_cols)
    nr, nc = pl.cdiv(R, br), pl.cdiv(HWc, bc)

    data_spec = pl.BlockSpec((br, bc), lambda i, j: (i, j))
    w_specs, w_inputs = _weight_inputs(w_arr, w_mode, data_spec, br)
    in_specs = [data_spec, data_spec] + w_specs
    inputs = [x2, t2] + w_inputs

    params = dict(b=b, log_space=log_space, relative=relative,
                  relative_eps=relative_eps, clip=clip,
                  soft_clamp_value=soft_clamp_value,
                  use_reciprocal=use_reciprocal,
                  approx_reciprocal=approx_reciprocal, weight_const=w_const)
    kernel = functools.partial(_dense_kernel, has_weights=(w_mode is not None),
                               return_mask=return_mask, **params)

    if return_mask:
        out_shape = (jax.ShapeDtypeStruct((R, HWc), jnp.float32),
                     jax.ShapeDtypeStruct((R, HWc), jnp.dtype(mask_dtype)))
        out_specs = (data_spec, data_spec)
    else:
        out_shape = jax.ShapeDtypeStruct((R, HWc), jnp.float32)
        out_specs = data_spec

    res = pl.pallas_call(
        kernel,
        out_shape=out_shape,
        grid_spec=pl.GridSpec(grid=(nr, nc), in_specs=in_specs,
                              out_specs=out_specs),
        compiler_params=pltpu.CompilerParams(
            dimension_semantics=("parallel", "parallel"),
            vmem_limit_bytes=vmem_limit),
    )(*inputs)

    if return_mask:
        loss, mask = res
        return loss.reshape(sel_shape), mask.reshape(sel_shape)
    return res.reshape(sel_shape)


def scale_loss_sum(x_all, t_all, xi, ti, *, b=1.0, log_space=False,
                   relative=True, relative_eps=0.1, clip=None,
                   soft_clamp_value=5.0, weights=None,
                   use_reciprocal=True, approx_reciprocal=False,
                   block_rows=None, block_cols=None):
    """Fused masked-sum variant: returns (sum_of_masked_loss, finite_count)."""
    x2, t2, w_arr, w_mode, w_const, sel_shape, R, HWc = _prepare(
        x_all, t_all, xi, ti, weights)

    sub = _sublane_multiple([x2.dtype, t2.dtype, jnp.float32])
    target, vmem_limit = _block_config()
    br, bc = _choose_blocks(R, HWc, sub, target, block_rows, block_cols)
    nr, nc = pl.cdiv(R, br), pl.cdiv(HWc, bc)

    data_spec = pl.BlockSpec((br, bc), lambda i, j: (i, j))
    w_specs, w_inputs = _weight_inputs(w_arr, w_mode, data_spec, br)
    in_specs = [data_spec, data_spec] + w_specs
    inputs = [x2, t2] + w_inputs

    params = dict(b=b, log_space=log_space, relative=relative,
                  relative_eps=relative_eps, clip=clip,
                  soft_clamp_value=soft_clamp_value,
                  use_reciprocal=use_reciprocal,
                  approx_reciprocal=approx_reciprocal, weight_const=w_const)
    kernel = functools.partial(_sum_kernel, has_weights=(w_mode is not None),
                               rows=R, cols=HWc, br=br, bc=bc, **params)

    acc_spec = pl.BlockSpec((8, 128), lambda i, j: (i, j))
    s, c = pl.pallas_call(
        kernel,
        out_shape=(jax.ShapeDtypeStruct((nr * 8, nc * 128), jnp.float32),
                   jax.ShapeDtypeStruct((nr * 8, nc * 128), jnp.float32)),
        grid_spec=pl.GridSpec(grid=(nr, nc), in_specs=in_specs,
                              out_specs=(acc_spec, acc_spec)),
        compiler_params=pltpu.CompilerParams(
            dimension_semantics=("parallel", "parallel"),
            vmem_limit_bytes=vmem_limit),
    )(*inputs)
    return jnp.sum(s), jnp.sum(c)


# --------------------------------------------------------------------------
# pure-jnp reference (exact divide)
# --------------------------------------------------------------------------
def _reference_scale_loss(x_all, t_all, xi, ti, *, b=1.0, log_space=False,
                          relative=True, relative_eps=0.1, clip=None,
                          soft_clamp_value=5.0, weights=None):
    x = _select(x_all, xi).astype(jnp.float32)
    t = _select(t_all, ti).astype(jnp.float32)
    finite = jnp.isfinite(t)
    t_safe = jnp.where(finite, t, 0.0)
    sp = jnp.where(x > 20.0, x, jnp.log1p(jnp.exp(jnp.minimum(x, 20.0))))
    if log_space:
        d = jnp.abs(jnp.log(jnp.maximum(sp, 1e-20)) -
                    jnp.log(jnp.maximum(t_safe, 1e-20)))
    else:
        d = jnp.abs(sp - t_safe)
    if clip is not None:
        d = jnp.clip(d, clip[0], clip[1])
    if relative:
        d = d / (b * (relative_eps + t_safe))
    else:
        d = d / b
    if soft_clamp_value is not None:
        d = jnp.where(d > soft_clamp_value,
                      soft_clamp_value + jnp.log(1.0 - soft_clamp_value + d),
                      d)
    ad = jnp.abs(d)
    loss = jnp.where(ad < 1.0, 0.5 * d * d, ad - 0.5)
    loss = jnp.where(finite, loss, 0.0)
    if weights is not None:
        w = jnp.asarray(weights, jnp.float32)
        w = jnp.reshape(w, (1,) * (loss.ndim - w.ndim) + w.shape)
        loss = loss * jnp.broadcast_to(w, loss.shape)
    return loss, finite.astype(jnp.float32)


# --------------------------------------------------------------------------
# tests
# --------------------------------------------------------------------------
if __name__ == "__main__":
    key = jax.random.PRNGKey(0)
    ks = jax.random.split(key, 12)

    def make_data(k1, k2, k3, k4, shape, nan_p=0.3, inf_p=0.05):
        x = jax.random.normal(k1, shape, dtype=jnp.float32)
        t = jnp.abs(jax.random.normal(k2, shape, dtype=jnp.float32)) + 0.5
        t = jnp.where(jax.random.uniform(k3, shape) < nan_p, jnp.nan, t)
        if inf_p > 0:
            t = jnp.where(jax.random.uniform(k4, shape) < inf_p, jnp.inf, t)
        return x, t

    # --- test 1: default config, single component, mask + sum -------------
    B, F, H, W, C = 2, 4, 8, 8, 3
    xi = ti = [2]
    x_all, t_all = make_data(ks[0], ks[1], ks[2], ks[3], (B, F, H, W, C))

    loss, mask = scale_loss(x_all, t_all, xi, ti, return_mask=True)
    loss = jax.block_until_ready(loss)
    ref_loss, ref_mask = _reference_scale_loss(x_all, t_all, xi, ti)
    assert loss.shape == (B, F, H, W, 1)
    assert jnp.allclose(loss, ref_loss, rtol=1e-4, atol=1e-5)
    assert jnp.array_equal(mask, ref_mask)
    assert bool(jnp.all(jnp.where(mask > 0.5, True, loss == 0.0)))

    loss_only = scale_loss(x_all, t_all, xi, ti)            # default: no mask stream
    assert jnp.allclose(jax.block_until_ready(loss_only), ref_loss,
                        rtol=1e-4, atol=1e-5)

    s, c = scale_loss_sum(x_all, t_all, xi, ti)
    s = jax.block_until_ready(s)
    assert jnp.allclose(s, jnp.sum(ref_loss), rtol=1e-4, atol=1e-3)
    assert jnp.allclose(c, jnp.sum(ref_mask), rtol=0, atol=0.5)

    # --- test 2: per-field weights, two components, multi-block grid ------
    B2, F2, H2, W2, C2 = 4, 4, 16, 16, 3
    xi2 = ti2 = [0, 1]
    x2a, t2a = make_data(ks[4], ks[5], ks[6], ks[7], (B2, F2, H2, W2, C2),
                         nan_p=0.25, inf_p=0.0)
    weights2 = jnp.asarray([1.0, 0.5, 2.0, 1.5],
                           jnp.float32).reshape(1, F2, 1, 1, 1)

    loss2 = scale_loss(x2a, t2a, xi2, ti2, weights=weights2,
                       block_rows=8, block_cols=128)        # grid (2, 4)
    loss2 = jax.block_until_ready(loss2)
    ref2, refm2 = _reference_scale_loss(x2a, t2a, xi2, ti2, weights=weights2)
    assert loss2.shape == (B2, F2, H2, W2, 2)
    assert jnp.allclose(loss2, ref2, rtol=1e-4, atol=1e-5)

    s2, c2 = scale_loss_sum(x2a, t2a, xi2, ti2, weights=weights2,
                            block_rows=8, block_cols=128)
    s2 = jax.block_until_ready(s2)
    assert jnp.allclose(s2, jnp.sum(ref2), rtol=1e-4, atol=1e-2)
    assert jnp.allclose(c2, jnp.sum(refm2), rtol=0, atol=0.5)

    # --- test 3: bf16 inputs + scalar weight folded as constant -----------
    xb = x_all.astype(jnp.bfloat16)
    tb = t_all.astype(jnp.bfloat16)
    loss3 = scale_loss(xb, tb, xi, ti, weights=0.25)
    ref3, _ = _reference_scale_loss(xb, tb, xi, ti, weights=0.25)
    assert jnp.allclose(jax.block_until_ready(loss3), ref3,
                        rtol=1e-4, atol=1e-5)

    # --- test 4: ragged shapes (R=3, HWc=35) + spatial-weight fallback ----
    B4, F4, H4, W4, C4 = 1, 3, 5, 7, 2
    xi4 = ti4 = [1]
    x4, t4 = make_data(ks[8], ks[9], ks[10], ks[11], (B4, F4, H4, W4, C4),
                       nan_p=0.3, inf_p=0.1)
    weights4 = jax.random.uniform(ks[0], (1, 1, H4, W4, 1),
                                  dtype=jnp.float32) + 0.5

    loss4 = scale_loss(x4, t4, xi4, ti4, weights=weights4)
    loss4 = jax.block_until_ready(loss4)
    ref4, refm4 = _reference_scale_loss(x4, t4, xi4, ti4, weights=weights4)
    assert loss4.shape == (B4, F4, H4, W4, 1)
    assert jnp.allclose(loss4, ref4, rtol=1e-4, atol=1e-5)

    s4, c4 = scale_loss_sum(x4, t4, xi4, ti4, weights=weights4)
    s4 = jax.block_until_ready(s4)
    assert jnp.allclose(s4, jnp.sum(ref4), rtol=1e-4, atol=1e-3)
    assert jnp.allclose(c4, jnp.sum(refm4), rtol=0, atol=0.5)

    # --- test 5: exact divide and pure-approx reciprocal paths ------------
    loss5 = scale_loss(x_all, t_all, xi, ti, use_reciprocal=False)
    assert jnp.allclose(jax.block_until_ready(loss5), ref_loss,
                        rtol=1e-5, atol=1e-6)
    loss5b = scale_loss(x_all, t_all, xi, ti, approx_reciprocal=True)
    assert jnp.allclose(jax.block_until_ready(loss5b), ref_loss,
                        rtol=5e-3, atol=1e-3)

    # --- test 6: log-space / non-relative configuration -------------------
    loss6 = scale_loss(x_all, t_all, xi, ti, log_space=True,
                       relative=False, b=2.0)
    ref6, _ = _reference_scale_loss(x_all, t_all, xi, ti, log_space=True,
                                    relative=False, b=2.0)
    assert jnp.allclose(jax.block_until_ready(loss6), ref6,
                        rtol=1e-4, atol=1e-5)

    print("KERNEL_OK")
</pallas_src>

<mosaic_0001>
module attributes {stable_mosaic.version = 11 : i64} {
  func.func @_dense_kernel(%arg0: i32, %arg1: i32, %arg2: memref<8x128xf32, #tpu.memory_space<vmem>>, %arg3: memref<8x128xf32, #tpu.memory_space<vmem>>, %arg4: memref<8x128xf32, #tpu.memory_space<vmem>>, %arg5: memref<8x128xf32, #tpu.memory_space<vmem>>) attributes {dimension_semantics = [#tpu.dimension_semantics<parallel>, #tpu.dimension_semantics<parallel>], iteration_bounds = array<i64: 1, 1>, scalar_prefetch = 0 : i64, scratch_operands = 0 : i64, tpu.core_type = #tpu.core_type<tc>, window_params = [{transform_indices = @transform_0, window_bounds = array<i64: 8, 128>}, {transform_indices = @transform_1, window_bounds = array<i64: 8, 128>}, {transform_indices = @transform_2, window_bounds = array<i64: 8, 128>}, {transform_indices = @transform_3, window_bounds = array<i64: 8, 128>}]} {
    %c0 = arith.constant 0 : index
    %c0_0 = arith.constant 0 : index
    %0 = vector.load %arg2[%c0, %c0_0] : memref<8x128xf32, #tpu.memory_space<vmem>>, vector<8x128xf32>
    %c0_1 = arith.constant 0 : index
    %c0_2 = arith.constant 0 : index
    %1 = vector.load %arg3[%c0_1, %c0_2] : memref<8x128xf32, #tpu.memory_space<vmem>>, vector<8x128xf32>
    %2 = tpu.weird %1 : vector<8x128xf32> -> vector<8x128xi1>
    %cst = arith.constant dense<true> : vector<8x128xi1>
    %3 = arith.xori %2, %cst : vector<8x128xi1>
    %cst_3 = arith.constant 0.000000e+00 : f32
    %4 = vector.broadcast %cst_3 : f32 to vector<8x128xf32>
    %5 = arith.select %3, %1, %4 : vector<8x128xi1>, vector<8x128xf32>
    %cst_4 = arith.constant 2.000000e+01 : f32
    %6 = vector.broadcast %cst_4 : f32 to vector<8x128xf32>
    %7 = arith.cmpf ogt, %0, %6 : vector<8x128xf32>
    %cst_5 = arith.constant 2.000000e+01 : f32
    %8 = vector.broadcast %cst_5 : f32 to vector<8x128xf32>
    %9 = arith.minimumf %0, %8 : vector<8x128xf32>
    %10 = math.exp %9 : vector<8x128xf32>
    %11 = math.log1p %10 : vector<8x128xf32>
    %12 = arith.select %7, %0, %11 : vector<8x128xi1>, vector<8x128xf32>
    %13 = arith.subf %12, %5 : vector<8x128xf32>
    %14 = math.absf %13 : vector<8x128xf32>
    %cst_6 = arith.constant 1.000000e-01 : f32
    %15 = vector.broadcast %cst_6 : f32 to vector<8x128xf32>
    %16 = arith.addf %15, %5 : vector<8x128xf32>
    %cst_7 = arith.constant 1.000000e+00 : f32
    %17 = vector.broadcast %cst_7 : f32 to vector<8x128xf32>
    %18 = arith.mulf %17, %16 : vector<8x128xf32>
    %19 = tpu.reciprocal %18 {approx = true} : vector<8x128xf32> -> vector<8x128xf32>
    %20 = arith.mulf %18, %19 : vector<8x128xf32>
    %cst_8 = arith.constant 2.000000e+00 : f32
    %21 = vector.broadcast %cst_8 : f32 to vector<8x128xf32>
    %22 = arith.subf %21, %20 : vector<8x128xf32>
    %23 = arith.mulf %19, %22 : vector<8x128xf32>
    %24 = arith.mulf %14, %23 : vector<8x128xf32>
    %cst_9 = arith.constant 5.000000e+00 : f32
    %25 = vector.broadcast %cst_9 : f32 to vector<8x128xf32>
    %26 = arith.cmpf ogt, %24, %25 : vector<8x128xf32>
    %cst_10 = arith.constant -4.000000e+00 : f32
    %27 = vector.broadcast %cst_10 : f32 to vector<8x128xf32>
    %28 = arith.addf %27, %24 : vector<8x128xf32>
    %29 = math.log %28 : vector<8x128xf32>
    %cst_11 = arith.constant 5.000000e+00 : f32
    %30 = vector.broadcast %cst_11 : f32 to vector<8x128xf32>
    %31 = arith.addf %30, %29 : vector<8x128xf32>
    %32 = arith.select %26, %31, %24 : vector<8x128xi1>, vector<8x128xf32>
    %cst_12 = arith.constant 1.000000e+00 : f32
    %33 = vector.broadcast %cst_12 : f32 to vector<8x128xf32>
    %34 = arith.cmpf olt, %32, %33 : vector<8x128xf32>
    %cst_13 = arith.constant 5.000000e-01 : f32
    %35 = vector.broadcast %cst_13 : f32 to vector<8x128xf32>
    %36 = arith.mulf %35, %32 : vector<8x128xf32>
    %37 = arith.mulf %36, %32 : vector<8x128xf32>
    %cst_14 = arith.constant 5.000000e-01 : f32
    %38 = vector.broadcast %cst_14 : f32 to vector<8x128xf32>
    %39 = arith.subf %32, %38 : vector<8x128xf32>
    %40 = arith.select %34, %37, %39 : vector<8x128xi1>, vector<8x128xf32>
    %cst_15 = arith.constant 0.000000e+00 : f32
    %41 = vector.broadcast %cst_15 : f32 to vector<8x128xf32>
    %42 = arith.select %3, %40, %41 : vector<8x128xi1>, vector<8x128xf32>
    %43 = arith.extui %3 : vector<8x128xi1> to vector<8x128xi32>
    %44 = arith.sitofp %43 : vector<8x128xi32> to vector<8x128xf32>
    %c0_16 = arith.constant 0 : index
    %c0_17 = arith.constant 0 : index
    %45 = vector.load %arg4[%c0_16, %c0_17] : memref<8x128xf32, #tpu.memory_space<vmem>>, vector<8x128xf32>
    tpu.vector_store %arg4[%c0_16, %c0_17], %42 {strides = array<i32>} : memref<8x128xf32, #tpu.memory_space<vmem>>, vector<8x128xf32>,
    %c0_18 = arith.constant 0 : index
    %c0_19 = arith.constant 0 : index
    %46 = vector.load %arg5[%c0_18, %c0_19] : memref<8x128xf32, #tpu.memory_space<vmem>>, vector<8x128xf32>
    tpu.vector_store %arg5[%c0_18, %c0_19], %44 {strides = array<i32>} : memref<8x128xf32, #tpu.memory_space<vmem>>, vector<8x128xf32>,
    return
  }
  func.func @transform_0(%arg0: i32, %arg1: i32) -> (i32, i32) {
    %c0_i32 = arith.constant 0 : i32
    return %arg0, %arg1 : i32, i32
  }
  func.func @transform_1(%arg0: i32, %arg1: i32) -> (i32, i32) {
    %c0_i32 = arith.constant 0 : i32
    return %arg0, %arg1 : i32, i32
  }
  func.func @transform_2(%arg0: i32, %arg1: i32) -> (i32, i32) {
    %c0_i32 = arith.constant 0 : i32
    return %arg0, %arg1 : i32, i32
  }
  func.func @transform_3(%arg0: i32, %arg1: i32) -> (i32, i32) {
    %c0_i32 = arith.constant 0 : i32
    return %arg0, %arg1 : i32, i32
  }
}

</mosaic_0001>

<llo_original>
// kernel: tpu_custom_call.1
$region0: #{tpu_custom_call.1}
  #allocation0 [shape = 'u32[]', space=smem, size = 0x4, offset = 0x4, fixed_abs, tag = 'smem constant byte address 0x4 - core index']
  #allocation1 [shape = 'u32[144,128]{1,0:T(1,128)}', space=vmem, size = 0x12000, scoped, tag = 'internal scratch']
  %s0 = inlined_call_operand.hbm [shape: f32[8,64], index: 0, kind: input, shape index: {}]
  %s1 = inlined_call_operand.hbm [shape: f32[8,64], index: 1, kind: input, shape index: {}]
  %s2 = inlined_call_operand.hbm [shape: f32[8,64], index: 2, kind: output, shape index: {0}]
  %s3 = inlined_call_operand.hbm [shape: f32[8,64], index: 3, kind: output, shape index: {1}]
  %4 = xla_tuple %s2, %s3
  %s5 = sld [smem:[#allocation0]]
  $region34: #{tpu_custom_call.1} parent=0
    _
  %s7 = ssub.s32 1, %s5
  %s8 = scalar_select 0, %s7, %s5
  $region1: #{tpu_custom_call.1} parent=0
    #allocation2 [shape = 'u8[4096]{0}', space=vmem, size = 0x1000, scoped, tag = 'input window, operand 0, single buffered']
    #allocation3 [shape = 's32[1]{0}', space=sflag, size = 0x4, scoped, tag = 'scoped memory for tpu_custom_call.1']
    #allocation4 [shape = 's32[1]{0}', space=sflag, size = 0x4, scoped, tag = 'scoped memory for tpu_custom_call.1']
    #allocation5 [shape = 'u8[4096]{0}', space=vmem, size = 0x1000, scoped, tag = 'input window, operand 1, single buffered']
    #allocation6 [shape = 's32[1]{0}', space=sflag, size = 0x4, scoped, tag = 'scoped memory for tpu_custom_call.1']
    #allocation7 [shape = 'u8[4096]{0}', space=vmem, size = 0x1000, scoped, tag = 'output window, operand 0, single buffered']
    #allocation8 [shape = 'u8[4096]{0}', space=vmem, size = 0x1000, scoped, tag = 'output window, operand 1, single buffered']
    #allocation9 [shape = 's32[1]{0}', space=sflag, size = 0x4, scoped, tag = 'scoped memory for tpu_custom_call.1']
    %9 = vsyncpa [#allocation3], 0
    %10 = vsyncpa [#allocation6], 0
    %11 = vsyncpa [#allocation4], 0
    %12 = vsyncpa [#allocation9], 0
    // Predicated region
    $region2: #{tpu_custom_call.1} parent=1 // pred_check
      _
    $region3: #{tpu_custom_call.1} parent=1 // pred_check_branch
      %14 = sbr.rel (0) target = $region5
    $region4: #{tpu_custom_call.1} parent=1 // pred_region
      %s16 = ssub.s32 128, 128
      %17 = vsyncadd [#allocation3], %s16
      %s19 = sshll.u32 [#allocation2], 4
      %s20 = int_to_ptr.vmem [resolvable:$true] %s19
      %22 = dma.hbm_to_vmem [thread:$0]  %s0, 128, %s20, [#allocation3]
    $region5: #{tpu_custom_call.1} parent=1 // pred_fallthru
      _
    // Predicated region
    $region6: #{tpu_custom_call.1} parent=1 // pred_check
      _
    $region7: #{tpu_custom_call.1} parent=1 // pred_check_branch
      %24 = sbr.rel (0) target = $region9
    $region8: #{tpu_custom_call.1} parent=1 // pred_region
      %s26 = ssub.s32 128, 128
      %27 = vsyncadd [#allocation6], %s26
      %s29 = sshll.u32 [#allocation5], 4
      %s30 = int_to_ptr.vmem [resolvable:$true] %s29
      %32 = dma.hbm_to_vmem [thread:$0]  %s1, 128, %s30, [#allocation6]
    $region9: #{tpu_custom_call.1} parent=1 // pred_fallthru
      _
    // Predicated region
    $region10: #{tpu_custom_call.1} parent=1 // pred_check
      _
    $region11: #{tpu_custom_call.1} parent=1 // pred_check_branch
      %34 = sbr.rel (0) target = $region13
    $region12: #{tpu_custom_call.1} parent=1 // pred_region
      %35 = dma.done [#allocation3], 128
    $region13: #{tpu_custom_call.1} parent=1 // pred_fallthru
      _
    // Predicated region
    $region14: #{tpu_custom_call.1} parent=1 // pred_check
      _
    $region15: #{tpu_custom_call.1} parent=1 // pred_check_branch
      %37 = sbr.rel (0) target = $region17
    $region16: #{tpu_custom_call.1} parent=1 // pred_region
      %38 = dma.done [#allocation6], 128
    $region17: #{tpu_custom_call.1} parent=1 // pred_fallthru
      _
    %v39 = vld [vmem:[#allocation2] sm:$0xff]
    %v40 = vld [vmem:[#allocation5] sm:$0xff]
    %vm41 = vweird.f32 %v40
    %vm42 = vmxor %vm41, 1
    %v43 = vsel %vm42, %v40, 0.0
    %vm44 = vcmp.gt.f32.partialorder %v39, 20.0
    %v45 = vmin.f32 %v39, 20.0
    %v46 = vmul.f32 %v45, 1.442695
    %v47 = vpow.pop %v46
    %v48 = vadd.f32 %v47, 1.0
    %v49 = vlog2.pop %v48
    %v50 = vmul.f32 %v49, 0.6931472
    %v51 = vmul.f32 -0.5, %v47
    %v52 = vadd.f32 %v51, 1.0
    %v53 = vmul.f32 %v52, %v47
    %v54 = vand.u32 2147483647, %v47
    %vm55 = vcmp.lt.f32.partialorder %v54, 0.0004427343
    %v56 = vsel %vm55, %v53, %v50
    %v57 = vsel %vm44, %v39, %v56
    %v58 = vsub.f32 %v57, %v43
    %v59 = vand.u32 2147483647, %v58
    %v60 = vadd.f32 %v43, 0.1
    %v61 = vrcp.pop %v60
    %v62 = vmul.f32 %v60, %v61
    %v63 = vsub.f32 2.0, %v62
    %v64 = vmul.f32 %v61, %v63
    %v65 = vmul.f32 %v59, %v64
    %vm66 = vcmp.gt.f32.partialorder %v65, 5.0
    %v67 = vadd.f32 %v65, -4.0
    %v68 = vlog2.pop %v67
    %v69 = vmul.f32 %v68, 0.6931472
    %v70 = vadd.f32 %v69, 5.0
    %v71 = vsel %vm66, %v70, %v65
    %vm72 = vcmp.lt.f32.partialorder %v71, 1.0
    %v73 = vmul.f32 %v71, 0.5
    %v74 = vmul.f32 %v73, %v71
    %v75 = vsub.f32 %v71, 0.5
    %v76 = vsel %vm72, %v74, %v75
    %v77 = vsel %vm42, %v76, 0.0
    %v78 = vsel %vm42, 1, 0
    %v79 = vcvt.s32.f32 %v78
    %80 = vst [vmem:[#allocation7] sm:$0xff] %v77
    %81 = vst [vmem:[#allocation8] sm:$0xff] %v79
    // Predicated region
    $region18: #{tpu_custom_call.1} parent=1 // pred_check
      _
    $region19: #{tpu_custom_call.1} parent=1 // pred_check_branch
      %83 = sbr.rel (0) target = $region21
    $region20: #{tpu_custom_call.1} parent=1 // pred_region
      %s85 = ssub.s32 128, 128
      %86 = vsyncadd [#allocation4], %s85
      %s88 = sshll.u32 [#allocation7], 4
      %s89 = int_to_ptr.vmem [resolvable:$true] %s88
      %91 = dma.vmem_to_hbm [thread:$0]  %s89, 128, %s2, [#allocation4]
    $region21: #{tpu_custom_call.1} parent=1 // pred_fallthru
      _
    // Predicated region
    $region22: #{tpu_custom_call.1} parent=1 // pred_check
      _
    $region23: #{tpu_custom_call.1} parent=1 // pred_check_branch
      %93 = sbr.rel (0) target = $region25
    $region24: #{tpu_custom_call.1} parent=1 // pred_region
      %s95 = ssub.s32 128, 128
      %96 = vsyncadd [#allocation9], %s95
      %s98 = sshll.u32 [#allocation8], 4
      %s99 = int_to_ptr.vmem [resolvable:$true] %s98
      %101 = dma.vmem_to_hbm [thread:$0]  %s99, 128, %s3, [#allocation9]
    $region25: #{tpu_custom_call.1} parent=1 // pred_fallthru
      _
    // Predicated region
    $region26: #{tpu_custom_call.1} parent=1 // pred_check
      _
    $region27: #{tpu_custom_call.1} parent=1 // pred_check_branch
      %103 = sbr.rel (0) target = $region29
    $region28: #{tpu_custom_call.1} parent=1 // pred_region
      %104 = dma.done [#allocation4], 128
    $region29: #{tpu_custom_call.1} parent=1 // pred_fallthru
      _
    // Predicated region
    $region30: #{tpu_custom_call.1} parent=1 // pred_check
      _
    $region31: #{tpu_custom_call.1} parent=1 // pred_check_branch
      %106 = sbr.rel (0) target = $region33
    $region32: #{tpu_custom_call.1} parent=1 // pred_region
      %107 = dma.done [#allocation9], 128
    $region33: #{tpu_custom_call.1} parent=1 // pred_fallthru
      _
    %108 = vsyncpa [#allocation3], 1
    %109 = vsyncpa [#allocation6], 1
    %110 = vsyncpa [#allocation4], 1
    %111 = vsyncpa [#allocation9], 1

</llo_original>
